<compile_context>
chip_gen: v7x
topology: tpu7x:2x2x1
jax: 0.10.0
libtpu: 0.0.40
codegen_flags: <defaults>
</compile_context>

<pallas_src>
import math

import jax
import jax.numpy as jnp
from jax import lax
from jax.experimental import pallas as pl
from jax.experimental.pallas import tpu as pltpu

D_MODEL = 32
MAX_LEN = 5000
DROPOUT_P = 0.1

_LANE = 512                                   # lane-dense last dim (multiple of 128)
_MAX_BLOCK_ROWS = 1024                        # 1024 x 512 x 4B = 2 MiB per block
_DROP_THRESHOLD = int(DROPOUT_P * (1 << 32))  # P(drop) = DROPOUT_P on uint32 hash
_KEEP_SCALE = 1.0 / (1.0 - DROPOUT_P)


def make_positional_encoding_buffer(d_model: int = D_MODEL, max_len: int = MAX_LEN):
    """Deterministic 'pe' buffer, identical math to the PyTorch __init__."""
    position = jnp.arange(max_len, dtype=jnp.float32)[:, None]             # [max_len, 1]
    div_term = jnp.exp(
        jnp.arange(0, d_model, 2, dtype=jnp.float32) * (-math.log(10000.0) / d_model)
    )
    pe = jnp.zeros((max_len, 1, d_model), jnp.float32)
    pe = pe.at[:, 0, 0::2].set(jnp.sin(position * div_term))
    pe = pe.at[:, 0, 1::2].set(jnp.cos(position * div_term))
    return pe


def _pe_dropout_kernel(seed_ref, x_ref, pe_ref, o_ref):
    # seed_ref : SMEM scalar-prefetch, shape (1,), int32
    # x_ref/pe_ref/o_ref : (ts, _LANE) lane-dense f32 blocks
    y = x_ref[...] + pe_ref[...]

    ts, lane = y.shape
    row0 = pl.program_id(0) * ts
    rows = lax.broadcasted_iota(jnp.int32, (ts, lane), 0) + row0
    cols = lax.broadcasted_iota(jnp.int32, (ts, lane), 1)
    gidx = (rows * lane + cols).astype(jnp.uint32)           # global element index

    # Stateless counter-based PRNG (lowbias32 finalizer). Works on Mosaic and in
    # interpret mode; mask is independent of tile size / grid sharding.
    # TODO(synk): torch.nn.Dropout's RNG stream cannot be reproduced bitwise.
    key = seed_ref[0].astype(jnp.uint32) * jnp.uint32(0x9E3779B9) + jnp.uint32(0x85EBCA6B)
    h = gidx ^ key
    h = (h ^ (h >> 16)) * jnp.uint32(0x7FEB352D)
    h = (h ^ (h >> 15)) * jnp.uint32(0x846CA68B)
    h = h ^ (h >> 16)

    keep = (h >= jnp.uint32(_DROP_THRESHOLD)).astype(jnp.float32)
    # Inverted dropout folded into one multiply (no zeros_like / select constant).
    o_ref[...] = y * (keep * jnp.float32(_KEEP_SCALE))


def positional_encoding(x, pe, seed: int = 0, *, training: bool = True):
    """x: [S, B, D] float32.  pe: [max_len, 1, D] float32.  Returns [S, B, D]."""
    S, B, D = x.shape
    pe_b = jnp.broadcast_to(pe[:S].astype(x.dtype), (S, B, D))

    if not training:
        # Dropout is identity in eval mode: a plain fused XLA add beats the
        # pallas_call launch + pipeline-prologue overhead.
        return x + pe_b

    # ---- layout plumbing: flatten to a lane-dense 2-D slab -------------------
    n = S * B * D
    rows = -(-n // _LANE)                        # ceil(n / LANE)
    if rows <= _MAX_BLOCK_ROWS:
        ts = max(rows, 1)                        # single full-extent block
    else:
        ts = _MAX_BLOCK_ROWS                     # multiple of 8 -> valid sublane tile
        rows = -(-rows // ts) * ts               # pad rows to a multiple of ts
    n_pad = rows * _LANE

    x_flat = x.reshape(-1)
    pe_flat = pe_b.reshape(-1)
    if n_pad != n:
        x_flat = jnp.pad(x_flat, (0, n_pad - n))
        pe_flat = jnp.pad(pe_flat, (0, n_pad - n))
    x2 = x_flat.reshape(rows, _LANE)
    pe2 = pe_flat.reshape(rows, _LANE)

    seed_arr = jnp.asarray([seed], jnp.int32)

    out2 = pl.pallas_call(
        _pe_dropout_kernel,
        out_shape=jax.ShapeDtypeStruct((rows, _LANE), x.dtype),
        grid_spec=pltpu.PrefetchScalarGridSpec(
            num_scalar_prefetch=1,
            grid=(rows // ts,),
            in_specs=[
                pl.BlockSpec((ts, _LANE), lambda i, sref: (i, 0)),
                pl.BlockSpec((ts, _LANE), lambda i, sref: (i, 0)),
            ],
            out_specs=pl.BlockSpec((ts, _LANE), lambda i, sref: (i, 0)),
        ),
        compiler_params=pltpu.CompilerParams(
            # Per-element stateless hash -> grid steps are independent;
            # "parallel" lets v7x shard the grid across both TensorCores.
            dimension_semantics=("parallel",),
        ),
    )(seed_arr, x2, pe2)

    return out2.reshape(-1)[:n].reshape(S, B, D)


if __name__ == "__main__":
    key = jax.random.PRNGKey(0)
    S, B, D = 8, 2, D_MODEL
    x = jax.random.normal(key, (S, B, D), dtype=jnp.float32)
    pe = make_positional_encoding_buffer(D, MAX_LEN)

    out = positional_encoding(x, pe, seed=0, training=True)
    jax.block_until_ready(out)
    assert out.shape == (S, B, D)

    # Training-path sanity: kept elements equal (x + pe) / (1 - p); dropped are 0.
    y_ref = x + pe[:S]
    kept = out != 0.0
    assert jnp.allclose(
        jnp.where(kept, out, 0.0),
        jnp.where(kept, y_ref * (1.0 / (1.0 - DROPOUT_P)), 0.0),
        atol=1e-5,
    ), "training-mode kept values mismatch"
    keep_frac = float(jnp.mean(kept.astype(jnp.float32)))
    assert 0.5 <= keep_frac <= 0.999, f"unexpected keep fraction {keep_frac}"

    # Eval-mode path must equal the pure-JAX reference exactly.
    out_eval = positional_encoding(x, pe, seed=0, training=False)
    jax.block_until_ready(out_eval)
    assert jnp.allclose(out_eval, y_ref, atol=1e-6), "eval-mode mismatch"

    print("KERNEL_OK")
</pallas_src>

<mosaic_0001>
module attributes {stable_mosaic.version = 11 : i64} {
  func.func @_pe_dropout_kernel(%arg0: i32, %arg1: memref<1xi32, #tpu.memory_space<smem>>, %arg2: memref<1x512xf32, #tpu.memory_space<vmem>>, %arg3: memref<1x512xf32, #tpu.memory_space<vmem>>, %arg4: memref<1x512xf32, #tpu.memory_space<vmem>>) attributes {dimension_semantics = [#tpu.dimension_semantics<parallel>], iteration_bounds = array<i64: 1>, scalar_prefetch = 1 : i64, scratch_operands = 0 : i64, tpu.core_type = #tpu.core_type<tc>, window_params = [{transform_indices = @transform_0, window_bounds = array<i64: 1, 512>}, {transform_indices = @transform_1, window_bounds = array<i64: 1, 512>}, {transform_indices = @transform_2, window_bounds = array<i64: 1, 512>}]} {
    %c0 = arith.constant 0 : index
    %c0_0 = arith.constant 0 : index
    %0 = vector.load %arg2[%c0, %c0_0] : memref<1x512xf32, #tpu.memory_space<vmem>>, vector<1x512xf32>
    %c0_1 = arith.constant 0 : index
    %c0_2 = arith.constant 0 : index
    %1 = vector.load %arg3[%c0_1, %c0_2] : memref<1x512xf32, #tpu.memory_space<vmem>>, vector<1x512xf32>
    %2 = arith.addf %0, %1 : vector<1x512xf32>
    %c1_i32 = arith.constant 1 : i32
    %3 = arith.muli %arg0, %c1_i32 : i32
    %4 = tpu.iota {dimensions = array<i32: 0>} : vector<1x512xi32>
    %5 = vector.broadcast %3 : i32 to vector<1x512xi32>
    %6 = arith.addi %4, %5 : vector<1x512xi32>
    %7 = tpu.iota {dimensions = array<i32: 1>} : vector<1x512xi32>
    %c512_i32 = arith.constant 512 : i32
    %8 = vector.broadcast %c512_i32 : i32 to vector<1x512xi32>
    %9 = arith.muli %6, %8 : vector<1x512xi32>
    %10 = arith.addi %9, %7 : vector<1x512xi32>
    %c0_3 = arith.constant 0 : index
    %11 = memref.load %arg1[%c0_3] : memref<1xi32, #tpu.memory_space<smem>>
    %c-1640531527_i32 = arith.constant -1640531527 : i32
    %12 = arith.muli %11, %c-1640531527_i32 : i32
    %c-2048144789_i32 = arith.constant -2048144789 : i32
    %13 = arith.addi %12, %c-2048144789_i32 : i32
    %14 = vector.broadcast %13 : i32 to vector<1x512xi32>
    %15 = arith.xori %10, %14 : vector<1x512xi32>
    %c16_i32 = arith.constant 16 : i32
    %16 = vector.broadcast %c16_i32 : i32 to vector<1x512xi32>
    %17 = arith.shrui %15, %16 : vector<1x512xi32>
    %18 = arith.xori %15, %17 : vector<1x512xi32>
    %c2146121005_i32 = arith.constant 2146121005 : i32
    %19 = vector.broadcast %c2146121005_i32 : i32 to vector<1x512xi32>
    %20 = arith.muli %18, %19 : vector<1x512xi32>
    %c15_i32 = arith.constant 15 : i32
    %21 = vector.broadcast %c15_i32 : i32 to vector<1x512xi32>
    %22 = arith.shrui %20, %21 : vector<1x512xi32>
    %23 = arith.xori %20, %22 : vector<1x512xi32>
    %c-2073254261_i32 = arith.constant -2073254261 : i32
    %24 = vector.broadcast %c-2073254261_i32 : i32 to vector<1x512xi32>
    %25 = arith.muli %23, %24 : vector<1x512xi32>
    %c16_i32_4 = arith.constant 16 : i32
    %26 = vector.broadcast %c16_i32_4 : i32 to vector<1x512xi32>
    %27 = arith.shrui %25, %26 : vector<1x512xi32>
    %28 = arith.xori %25, %27 : vector<1x512xi32>
    %c429496729_i32 = arith.constant 429496729 : i32
    %29 = vector.broadcast %c429496729_i32 : i32 to vector<1x512xi32>
    %30 = arith.cmpi uge, %28, %29 : vector<1x512xi32>
    %31 = arith.extui %30 : vector<1x512xi1> to vector<1x512xi32>
    %32 = arith.sitofp %31 : vector<1x512xi32> to vector<1x512xf32>
    %cst = arith.constant 1.11111116 : f32
    %33 = vector.broadcast %cst : f32 to vector<1x512xf32>
    %34 = arith.mulf %32, %33 : vector<1x512xf32>
    %35 = arith.mulf %2, %34 : vector<1x512xf32>
    %c0_5 = arith.constant 0 : index
    %c0_6 = arith.constant 0 : index
    %36 = vector.load %arg4[%c0_5, %c0_6] : memref<1x512xf32, #tpu.memory_space<vmem>>, vector<1x512xf32>
    tpu.vector_store %arg4[%c0_5, %c0_6], %35 {strides = array<i32>} : memref<1x512xf32, #tpu.memory_space<vmem>>, vector<1x512xf32>,
    return
  }
  func.func @transform_0(%arg0: i32, %arg1: memref<1xi32, #tpu.memory_space<smem>>) -> (i32, i32) {
    %c0_i32 = arith.constant 0 : i32
    %c0_i32_0 = arith.constant 0 : i32
    return %arg0, %c0_i32 : i32, i32
  }
  func.func @transform_1(%arg0: i32, %arg1: memref<1xi32, #tpu.memory_space<smem>>) -> (i32, i32) {
    %c0_i32 = arith.constant 0 : i32
    %c0_i32_0 = arith.constant 0 : i32
    return %arg0, %c0_i32 : i32, i32
  }
  func.func @transform_2(%arg0: i32, %arg1: memref<1xi32, #tpu.memory_space<smem>>) -> (i32, i32) {
    %c0_i32 = arith.constant 0 : i32
    %c0_i32_0 = arith.constant 0 : i32
    return %arg0, %c0_i32 : i32, i32
  }
}

</mosaic_0001>

<llo_original>
// kernel: tpu_custom_call.1
$region0: #{tpu_custom_call.1}
  #allocation0 [shape = 'u32[]', space=smem, size = 0x4, offset = 0x4, fixed_abs, tag = 'smem constant byte address 0x4 - core index']
  #allocation1 [shape = 'u32[144,128]{1,0:T(1,128)}', space=vmem, size = 0x12000, scoped, tag = 'internal scratch']
  #allocation2 [shape = 's32[1]{0}', space=sflag, size = 0x4, scoped, tag = 'scoped memory for tpu_custom_call.1']
  #allocation3 [shape = 's32[1]{0:T(128)S(6)}', space=smem, size = 0x200, scoped, tag = 'prefetched SMEM operand 0']
  %s0 = inlined_call_operand.<no memory space> [shape: s32[1], index: 0, kind: input, shape index: {}]
  %s1 = inlined_call_operand.hbm [shape: f32[1,512], index: 1, kind: input, shape index: {}]
  %s2 = inlined_call_operand.vmem [shape: f32[1,512], index: 2, kind: input, shape index: {}]
  %s3 = inlined_call_operand.hbm [shape: f32[1,512], index: 3, kind: output, shape index: {}]
  %s4 = sld [smem:[#allocation0]]
  $region22: #{tpu_custom_call.1} parent=0
    _
  %s6 = ssub.s32 1, %s4
  %s7 = scalar_select 0, %s6, %s4
  %8 = sst [smem:[#allocation3]] %s0
  $region1: #{tpu_custom_call.1} parent=0
    #allocation4 [shape = 'u8[2048]{0}', space=vmem, size = 0x800, scoped, tag = 'input window, operand 1, single buffered']
    #allocation5 [shape = 's32[1]{0}', space=sflag, size = 0x4, scoped, tag = 'scoped memory for tpu_custom_call.1']
    #allocation6 [shape = 's32[1]{0}', space=sflag, size = 0x4, scoped, tag = 'scoped memory for tpu_custom_call.1']
    #allocation7 [shape = 'u8[2048]{0}', space=vmem, size = 0x800, scoped, tag = 'output window, operand 0, single buffered']
    %9 = vsyncpa [#allocation5], 0
    %10 = vsyncpa [#allocation6], 0
    // Predicated region
    $region2: #{tpu_custom_call.1} parent=1 // pred_check
      _
    $region3: #{tpu_custom_call.1} parent=1 // pred_check_branch
      %12 = sbr.rel (0) target = $region5
    $region4: #{tpu_custom_call.1} parent=1 // pred_region
      %s14 = ssub.s32 64, 64
      %15 = vsyncadd [#allocation5], %s14
      %s17 = sshll.u32 [#allocation4], 4
      %s18 = int_to_ptr.vmem [resolvable:$true] %s17
      %20 = dma.hbm_to_vmem [thread:$0]  %s1, 64, %s18, [#allocation5]
    $region5: #{tpu_custom_call.1} parent=1 // pred_fallthru
      _
    // Predicated region
    $region6: #{tpu_custom_call.1} parent=1 // pred_check
      _
    $region7: #{tpu_custom_call.1} parent=1 // pred_check_branch
      %22 = sbr.rel (0) target = $region9
    $region8: #{tpu_custom_call.1} parent=1 // pred_region
      _
    $region9: #{tpu_custom_call.1} parent=1 // pred_fallthru
      _
    // Predicated region
    $region10: #{tpu_custom_call.1} parent=1 // pred_check
      _
    $region11: #{tpu_custom_call.1} parent=1 // pred_check_branch
      %24 = sbr.rel (0) target = $region13
    $region12: #{tpu_custom_call.1} parent=1 // pred_region
      %25 = dma.done [#allocation5], 64
    $region13: #{tpu_custom_call.1} parent=1 // pred_fallthru
      _
    %v26 = vld [vmem:[#allocation4] sm:$0xf]
    %v27 = vld [vmem:[%s2] sm:$0xf]
    %v28 = vadd.f32 %v26, %v27
    %v29 = vlaneseq
    %v30 = vshrl.u32 %v29, 7
    %v31 = vstv 0
    %v32 = vadd.s32 %v30, %v31
    %v33 = vlaneseq
    %v34 = vand.u32 %v33, 127
    %v35 = vadd.s32 %v34, 128
    %v36 = vadd.s32 %v34, 256
    %v37 = vadd.s32 %v34, 384
    %v38 = vmul.u32 %v32, 512
    %v39 = vadd.s32 %v38, %v34
    %v40 = vadd.s32 %v38, %v35
    %v41 = vadd.s32 %v38, %v36
    %v42 = vadd.s32 %v38, %v37
    %s43 = sld [smem:[#allocation3]]
    %s44 = smul.u32 %s43, 2654435769
    %s45 = sadd.s32 %s44, 2246822507
    %v46 = vstv %s45
    %v47 = vxor.u32 %v39, %v46
    %v48 = vxor.u32 %v40, %v46
    %v49 = vxor.u32 %v41, %v46
    %v50 = vxor.u32 %v42, %v46
    %v51 = vshrl.u32 %v47, 16
    %v52 = vshrl.u32 %v48, 16
    %v53 = vshrl.u32 %v49, 16
    %v54 = vshrl.u32 %v50, 16
    %v55 = vxor.u32 %v47, %v51
    %v56 = vxor.u32 %v48, %v52
    %v57 = vxor.u32 %v49, %v53
    %v58 = vxor.u32 %v50, %v54
    %v59 = vmul.u32 %v55, 2146121005
    %v60 = vmul.u32 %v56, 2146121005
    %v61 = vmul.u32 %v57, 2146121005
    %v62 = vmul.u32 %v58, 2146121005
    %v63 = vshrl.u32 %v59, 15
    %v64 = vshrl.u32 %v60, 15
    %v65 = vshrl.u32 %v61, 15
    %v66 = vshrl.u32 %v62, 15
    %v67 = vxor.u32 %v59, %v63
    %v68 = vxor.u32 %v60, %v64
    %v69 = vxor.u32 %v61, %v65
    %v70 = vxor.u32 %v62, %v66
    %v71 = vmul.u32 %v67, 2221713035
    %v72 = vmul.u32 %v68, 2221713035
    %v73 = vmul.u32 %v69, 2221713035
    %v74 = vmul.u32 %v70, 2221713035
    %v75 = vshrl.u32 %v71, 16
    %v76 = vshrl.u32 %v72, 16
    %v77 = vshrl.u32 %v73, 16
    %v78 = vshrl.u32 %v74, 16
    %v79 = vxor.u32 %v71, %v75
    %v80 = vxor.u32 %v72, %v76
    %v81 = vxor.u32 %v73, %v77
    %v82 = vxor.u32 %v74, %v78
    %vm83 = vcmp.ge.u32.totalorder %v79, 429496729
    %vm84 = vcmp.ge.u32.totalorder %v80, 429496729
    %vm85 = vcmp.ge.u32.totalorder %v81, 429496729
    %vm86 = vcmp.ge.u32.totalorder %v82, 429496729
    %v87 = vsel %vm83, 1, 0
    %v88 = vsel %vm84, 1, 0
    %v89 = vsel %vm85, 1, 0
    %v90 = vsel %vm86, 1, 0
    %v91 = vcvt.s32.f32 %v87
    %v92 = vcvt.s32.f32 %v88
    %v93 = vcvt.s32.f32 %v89
    %v94 = vcvt.s32.f32 %v90
    %v95 = vmul.f32 %v91, 1.1111112
    %v96 = vmul.f32 %v92, 1.1111112
    %v97 = vmul.f32 %v93, 1.1111112
    %v98 = vmul.f32 %v94, 1.1111112
    %v103 = vcombine.low %v95, %v96
    %v104 = vcombine.low %v97, %v98
    %v106 = vunpack.c.l.s4 1966171168
    %v107 = vunpack.c.0.s8 %v106
    %v108 = vlaneseq
    %v109 = vshrl.u32 %v108, 7
    %v110 = vsub.s32 %v107, %v109
    %v111 = vrot.slane %v103, %v110
    %v113 = vunpack.c.l.s4 1966171168
    %v114 = vunpack.c.0.s8 %v113
    %v115 = vlaneseq
    %v116 = vshrl.u32 %v115, 7
    %v117 = vsub.s32 %v114, %v116
    %v118 = vrot.slane %v104, %v117
    %v119 = vcombine.low %v111, %v118
    %v121 = vunpack.c.l.s4 1966171168
    %v122 = vunpack.c.0.s8 %v121
    %v123 = vlaneseq
    %v124 = vshrl.u32 %v123, 7
    %v125 = vsub.s32 %v122, %v124
    %v126 = vrot.slane %v119, %v125
    %v128 = vmul.f32 %v28, %v126
    %v129 = vlaneseq
    %vm130 = vcmp.ge.s32.totalorder %v129, 0
    %vm131 = vcmp.lt.s32.totalorder %v129, 512
    %vm132 = vmand %vm130, %vm131
    %133 = vst.msk [vmem:[#allocation7] sm:$0xf] %vm132, %v128
    // Predicated region
    $region14: #{tpu_custom_call.1} parent=1 // pred_check
      _
    $region15: #{tpu_custom_call.1} parent=1 // pred_check_branch
      %135 = sbr.rel (0) target = $region17
    $region16: #{tpu_custom_call.1} parent=1 // pred_region
      %s137 = ssub.s32 64, 64
      %138 = vsyncadd [#allocation6], %s137
      %s140 = sshll.u32 [#allocation7], 4
      %s141 = int_to_ptr.vmem [resolvable:$true] %s140
      %143 = dma.vmem_to_hbm [thread:$0]  %s141, 64, %s3, [#allocation6]
    $region17: #{tpu_custom_call.1} parent=1 // pred_fallthru
      _
    // Predicated region
    $region18: #{tpu_custom_call.1} parent=1 // pred_check
      _
    $region19: #{tpu_custom_call.1} parent=1 // pred_check_branch
      %145 = sbr.rel (0) target = $region21
    $region20: #{tpu_custom_call.1} parent=1 // pred_region
      %146 = dma.done [#allocation6], 64
    $region21: #{tpu_custom_call.1} parent=1 // pred_fallthru
      _
    %147 = vsyncpa [#allocation5], 1
    %148 = vsyncpa [#allocation6], 1

</llo_original>
